<compile_context>
chip_gen: v5e
topology: v5e:2x2
jax: 0.10.0
libtpu: 0.0.40
codegen_flags: <defaults>
</compile_context>

<pallas_src>
import functools

import numpy as np

import jax
import jax.numpy as jnp
from jax import lax
from jax.experimental import pallas as pl
from jax.experimental.pallas import tpu as pltpu


def _round8(n):
    return ((n + 7) // 8) * 8


def _round128(n):
    return ((n + 127) // 128) * 128


def _softplus(x):
    # Numerically stable softplus from exp/log/abs/max (safe Mosaic lowerings).
    return jnp.maximum(x, 0.0) + jnp.log(1.0 + jnp.exp(-jnp.abs(x)))


# ----------------------------------------------------------------------------
# Fused Pallas kernel: the whole forward pass
# ----------------------------------------------------------------------------
def _tcn_kernel(x_ref, w_ref, out_ref, *, layout, has_ds, num_inputs,
                num_channels, kernel_size, B, L):
    """x_ref : (C_pad, B*L) lane-dense activations, lane = b*L + t.
    w_ref : (rows, 128)  single packed parameter slab (see prepare_params).
    out_ref: (1, 128)    lane-dense head output; cols [b*8 : b*8+8] = batch b's
                         [sp_v, sp_mean, sp_alpha, sp_beta, dp_v, ...].
    """
    BL = B * L
    nf = len(kernel_size)
    k_max = max(kernel_size)
    pos = lax.broadcasted_iota(jnp.int32, (1, BL), 1) % L     # time within seg

    def view(name):
        r, h, w = layout[name]                                # static ints
        return w_ref[r:r + h, 0:w]

    def causal_shift(v, s):
        # out[:, b*L + t] = v[:, b*L + t - s] if t >= s else 0
        if s == 0:
            return v
        return jnp.where(pos >= s, pltpu.roll(v, shift=s, axis=1), 0.0)

    h = x_ref[...].astype(jnp.float32)                        # (ci0_pad, B*L)
    in_ch = num_inputs
    for i, out_ch in enumerate(num_channels):
        d = 2 ** i
        ci = _round8(in_ch)
        co = _round8(out_ch)

        # --- fused first convs (all branches [+ level-0 downsample]): 1 matmul
        slab1 = jnp.concatenate(
            [causal_shift(h, k * d) for k in range(k_max)], axis=0)   # (k_max*ci, BL)
        z1 = jnp.dot(view("w1_%d" % i), slab1,
                     preferred_element_type=jnp.float32) + view("b1_%d" % i)
        t_all = jnp.maximum(z1[0:nf * co, :], 0.0)            # relu'd conv1 of all branches
        res = z1[nf * co:(nf + 1) * co, :] if has_ds[i] else h  # no ReLU on downsample

        # --- fused second convs (block-diagonal weights): 1 matmul -----------
        # shifts of t_all are shared across branches (one roll covers both)
        shifted = {0: t_all}
        for k in range(1, k_max):
            shifted[k * d] = causal_shift(t_all, k * d)
        parts = []
        for j, kj in enumerate(kernel_size):
            for k in range(kj):
                parts.append(shifted[k * d][j * co:(j + 1) * co, :])
        slab2 = jnp.concatenate(parts, axis=0)                # (sum(K)*co, BL)
        z2 = jnp.maximum(
            jnp.dot(view("w2_%d" % i), slab2,
                    preferred_element_type=jnp.float32) + view("b2_%d" % i), 0.0)
        feats = z2[0:co, :]
        for j in range(1, nf):                                # relu-then-sum (PyTorch order)
            feats = feats + z2[j * co:(j + 1) * co, :]

        h = jnp.maximum(feats + res, 0.0)                     # residual + ReLU
        in_ch = out_ch

    # --- final 1x1 conv + block-diagonal fused fc1|fc2 + evidential heads ----
    # (conv bias is folded into the fc bias at prep time)
    y = jnp.dot(view("conv_w"), h, preferred_element_type=jnp.float32)   # (1, B*L)
    z = jnp.dot(y, view("fc_bd"),
                preferred_element_type=jnp.float32) + view("fc_b")       # (1, 128)
    c4 = lax.broadcasted_iota(jnp.int32, z.shape, 1) % 4      # (v, mean, alpha, beta)
    zh = jnp.where(c4 == 1, z, _softplus(z))                  # mean passes through
    zh = zh + jnp.where(c4 == 2, 1.0, 0.0)                    # alpha += 1
    out_ref[...] = zh.astype(out_ref.dtype)


# ----------------------------------------------------------------------------
# Parameter construction (PyTorch layout, deterministic synthetic weights)
# ----------------------------------------------------------------------------
def init_params(key, num_inputs, num_channels, kernel_size, seq_len):
    # TODO(synk): weight_norm is an identity reparameterization at init; loading
    # a trained checkpoint would require applying g*v/||v|| here.
    # Scale 0.1 (instead of the module's 0.01 init) so the in-script numerical
    # check against the pure-JAX reference is meaningful; forward is init-agnostic.
    s = 0.1
    params = {"blocks": []}
    for i, out_ch in enumerate(num_channels):
        in_ch = num_inputs if i == 0 else num_channels[i - 1]
        level = []
        for k in kernel_size:
            key, k1, k2, k3, k4 = jax.random.split(key, 5)
            level.append(dict(
                w1=s * jax.random.normal(k1, (out_ch, in_ch, k), jnp.float32),
                b1=s * jax.random.normal(k2, (out_ch,), jnp.float32),
                w2=s * jax.random.normal(k3, (out_ch, out_ch, k), jnp.float32),
                b2=s * jax.random.normal(k4, (out_ch,), jnp.float32)))
        params["blocks"].append(level)

    key, kd, kdb, kc, kcb, k1w, k1b, k2w, k2b = jax.random.split(key, 9)
    params["downsample_w"] = s * jax.random.normal(
        kd, (num_channels[0], num_inputs, 1), jnp.float32)
    params["downsample_b"] = s * jax.random.normal(
        kdb, (num_channels[0],), jnp.float32)
    params["conv_w"] = s * jax.random.normal(
        kc, (1, num_channels[-1], 1), jnp.float32)
    params["conv_b"] = s * jax.random.normal(kcb, (1,), jnp.float32)
    # PyTorch nn.Linear layout: weight (out, in), bias (out,)
    params["fc1_w"] = s * jax.random.normal(k1w, (4, seq_len), jnp.float32)
    params["fc1_b"] = s * jax.random.normal(k1b, (4,), jnp.float32)
    params["fc2_w"] = s * jax.random.normal(k2w, (4, seq_len), jnp.float32)
    params["fc2_b"] = s * jax.random.normal(k2b, (4,), jnp.float32)
    return params


def _conv_w2d(w_pt, ci_pad, co_pad, k_slots=None):
    """(C_out, C_in, K) PyTorch conv weight -> (co_pad, k_slots*ci_pad) matmul
    weight; tap block k multiplies the input shifted right by k*dilation
    (padding=(K-1)*dilation + Chomp1d convention).  Unused tap slots are zero."""
    c_out, c_in, k = w_pt.shape
    if k_slots is None:
        k_slots = k
    w = w_pt[:, :, ::-1]                                      # tap-shift-major
    w = jnp.pad(w, ((0, co_pad - c_out), (0, ci_pad - c_in), (0, k_slots - k)))
    w = jnp.transpose(w, (0, 2, 1))                           # (co_p, k_slots, ci_p)
    return w.reshape(co_pad, k_slots * ci_pad)


def _bias_col(b, pad_to):
    return jnp.pad(b, (0, pad_to - b.shape[0])).reshape(pad_to, 1)


def prepare_params(params_pt, num_inputs, num_channels, kernel_size, B, L):
    """Fuse + pack all weights into ONE lane-dense (rows, 128) f32 slab and a
    static row/shape layout table (plain Python ints)."""
    # The PyTorch module has a single shared downsample Conv1d(num_inputs,
    # num_channels[0], 1); only consistent when channels change solely at level 0.
    assert all(c == num_channels[0] for c in num_channels), (
        "shared downsample supports a channel change only at level 0")
    assert B * 8 <= 128

    nf = len(kernel_size)
    k_max = max(kernel_size)
    entries, has_ds = [], []

    in_ch = num_inputs
    for i, out_ch in enumerate(num_channels):
        ci, co = _round8(in_ch), _round8(out_ch)
        ds = in_ch != out_ch
        has_ds.append(ds)
        blocks = params_pt["blocks"][i]

        # fused first-conv stack: [branch_0 conv1 ; branch_1 conv1 ; (downsample)]
        w1_rows = [_conv_w2d(blocks[j]["w1"], ci, co, k_max) for j in range(nf)]
        b1_rows = [_bias_col(blocks[j]["b1"], co) for j in range(nf)]
        if ds:
            w1_rows.append(_conv_w2d(params_pt["downsample_w"], ci, co, k_max))
            b1_rows.append(_bias_col(params_pt["downsample_b"], co))
        entries.append(("w1_%d" % i, jnp.concatenate(w1_rows, axis=0)))
        entries.append(("b1_%d" % i, jnp.concatenate(b1_rows, axis=0)))

        # fused second-conv stack: block-diagonal over branches
        total_cols = sum(kernel_size) * co
        w2_rows, col = [], 0
        for j, kj in enumerate(kernel_size):
            blk = _conv_w2d(blocks[j]["w2"], co, co)          # (co, kj*co)
            w2_rows.append(jnp.pad(blk, ((0, 0),
                                         (col, total_cols - col - kj * co))))
            col += kj * co
        entries.append(("w2_%d" % i, jnp.concatenate(w2_rows, axis=0)))
        entries.append(("b2_%d" % i, jnp.concatenate(
            [_bias_col(blocks[j]["b2"], co) for j in range(nf)], axis=0)))
        in_ch = out_ch

    co_last = _round8(num_channels[-1])
    entries.append(("conv_w", _conv_w2d(params_pt["conv_w"], co_last, 1)))

    # block-diagonal fused fc1|fc2 over batches, final-conv bias folded in
    fc_w = jnp.concatenate([params_pt["fc1_w"].T, params_pt["fc2_w"].T],
                           axis=1)                            # (L, 8)
    fc_bd = jnp.zeros((B * L, 128), jnp.float32)
    for b in range(B):
        fc_bd = fc_bd.at[b * L:(b + 1) * L, b * 8:b * 8 + 8].set(fc_w)
    fc_b8 = jnp.concatenate([params_pt["fc1_b"], params_pt["fc2_b"]], axis=0)
    fc_b = jnp.zeros((1, 128), jnp.float32).at[0, :B * 8].set(jnp.tile(fc_b8, B))
    fc_b = fc_b + params_pt["conv_b"][0] * jnp.sum(fc_bd, axis=0, keepdims=True)
    entries.append(("fc_bd", fc_bd))
    entries.append(("fc_b", fc_b))

    # pack everything into one contiguous lane-dense slab (one prologue DMA)
    width = max(128, _round128(max(a.shape[1] for _, a in entries)))
    layout, chunks, row = {}, [], 0
    for name, a in entries:
        h, w = a.shape
        hp = _round8(h)                                       # tile-aligned rows
        chunks.append(jnp.pad(a.astype(jnp.float32),
                              ((0, hp - h), (0, width - w))))
        layout[name] = (row, h, w)
        row += hp
    slab = jnp.concatenate(chunks, axis=0)                    # (rows, 128)
    return slab, dict(layout=layout, has_ds=tuple(has_ds))


def _fused_cost(num_inputs, num_channels, kernel_size, B, L):
    nf = len(kernel_size)
    k_max = max(kernel_size)
    flops = 0
    in_ch = num_inputs
    for out_ch in num_channels:
        ci, co = _round8(in_ch), _round8(out_ch)
        n_stack = nf * co + (co if in_ch != out_ch else 0)
        flops += 2 * n_stack * (k_max * ci) * B * L           # fused first convs
        flops += 2 * (nf * co) * (sum(kernel_size) * co) * B * L  # fused second convs
        in_ch = out_ch
    flops += 2 * _round8(num_channels[-1]) * B * L            # final 1x1 conv
    flops += 2 * B * L * 128                                  # block-diag fc
    return flops, 2 * 128                                     # softplus exp+log


# ----------------------------------------------------------------------------
# Forward pass (matches TemporalConvNet.forward in eval mode)
# ----------------------------------------------------------------------------
def temporal_conv_net_forward(slab, x, *, spec, num_inputs, num_channels,
                              kernel_size):
    """x: (B, num_inputs, L) float32 -> (sp, dp), each (B, 4)."""
    B, c_in, L = x.shape
    assert c_in == num_inputs
    assert L == 64, "TemporalConvNet requires seq_len == 64 (Linear(64, 4))"

    # lane-dense layout plumbing (outside the kernel): (B, C, L) -> (C_pad, B*L)
    c_pad = _round8(c_in)
    x2d = jnp.transpose(x, (1, 0, 2)).reshape(c_in, B * L).astype(jnp.float32)
    if c_pad > c_in:
        x2d = jnp.pad(x2d, ((0, c_pad - c_in), (0, 0)))

    flops, transcendentals = _fused_cost(num_inputs, num_channels, kernel_size,
                                         B, L)
    bytes_accessed = 4 * (x2d.size + slab.size + 128)

    kernel = functools.partial(
        _tcn_kernel, layout=spec["layout"], has_ds=spec["has_ds"],
        num_inputs=num_inputs, num_channels=tuple(num_channels),
        kernel_size=tuple(kernel_size), B=B, L=L)

    out = pl.pallas_call(
        kernel,
        out_shape=jax.ShapeDtypeStruct((1, 128), jnp.float32),
        cost_estimate=pl.CostEstimate(flops=flops,
                                      transcendentals=transcendentals,
                                      bytes_accessed=bytes_accessed),
    )(x2d, slab)

    z = out[0, :B * 8].reshape(B, 8)
    return z[:, :4].astype(x.dtype), z[:, 4:].astype(x.dtype)


# ----------------------------------------------------------------------------
# Pure-JAX reference (mirrors the PyTorch forward) for correctness checking
# ----------------------------------------------------------------------------
def _ref_causal_conv(x, w, b, dilation):
    # x: (B, C_in, L); w: (C_out, C_in, K); padding=(K-1)*d on both sides then
    # Chomp1d == left-pad only + VALID.
    k = w.shape[-1]
    pad = (k - 1) * dilation
    xp = jnp.pad(x, ((0, 0), (0, 0), (pad, 0)))
    out = lax.conv_general_dilated(
        xp, w, window_strides=(1,), padding="VALID", rhs_dilation=(dilation,),
        dimension_numbers=("NCH", "OIH", "NCH"))
    return out + b[None, :, None]


def reference_forward(params_pt, x, num_inputs, num_channels, kernel_size):
    h = x
    in_ch = num_inputs
    for i, out_ch in enumerate(num_channels):
        d = 2 ** i
        feats = None
        for j in range(len(kernel_size)):
            blk = params_pt["blocks"][i][j]
            t = jax.nn.relu(_ref_causal_conv(h, blk["w1"], blk["b1"], d))
            t = jax.nn.relu(_ref_causal_conv(t, blk["w2"], blk["b2"], d))
            feats = t if feats is None else feats + t
        if in_ch != out_ch:
            h = _ref_causal_conv(h, params_pt["downsample_w"],
                                 params_pt["downsample_b"], 1)
        h = jax.nn.relu(feats + h)
        in_ch = out_ch
    y = _ref_causal_conv(h, params_pt["conv_w"], params_pt["conv_b"], 1)
    yf = y.reshape(y.shape[0], -1)                            # (B, L)
    sp = yf @ params_pt["fc1_w"].T + params_pt["fc1_b"]
    dp = yf @ params_pt["fc2_w"].T + params_pt["fc2_b"]

    def head(z):
        return jnp.concatenate([jax.nn.softplus(z[:, 0:1]), z[:, 1:2],
                                jax.nn.softplus(z[:, 2:3]) + 1.0,
                                jax.nn.softplus(z[:, 3:4])], axis=1)
    return head(sp), head(dp)


# ----------------------------------------------------------------------------
if __name__ == "__main__":
    # The flatten feeds Linear(64, 4) and the final 1x1 conv has one output
    # channel, so seq_len must be 64.  B * SEQ_LEN == 128 -> the lane axis of
    # every matmul is exactly one full 128-lane vreg.
    B = 2
    NUM_INPUTS = 3
    NUM_CHANNELS = [8, 8]
    KERNEL_SIZE = [3, 5]
    SEQ_LEN = 64

    key = jax.random.PRNGKey(0)
    key, kx = jax.random.split(key)
    x = jax.random.normal(kx, (B, NUM_INPUTS, SEQ_LEN), jnp.float32)

    params_pt = init_params(key, NUM_INPUTS, NUM_CHANNELS, KERNEL_SIZE, SEQ_LEN)
    slab, spec = prepare_params(params_pt, NUM_INPUTS, NUM_CHANNELS,
                                KERNEL_SIZE, B, SEQ_LEN)

    fwd = jax.jit(functools.partial(temporal_conv_net_forward,
                                    spec=spec,
                                    num_inputs=NUM_INPUTS,
                                    num_channels=NUM_CHANNELS,
                                    kernel_size=KERNEL_SIZE))
    sp, dp = fwd(slab, x)
    jax.block_until_ready((sp, dp))

    assert sp.shape == (B, 4) and dp.shape == (B, 4)
    assert bool(jnp.all(jnp.isfinite(sp))) and bool(jnp.all(jnp.isfinite(dp)))

    # numerical check against the pure-JAX reference of the PyTorch forward
    sp_ref, dp_ref = reference_forward(params_pt, x, NUM_INPUTS, NUM_CHANNELS,
                                       KERNEL_SIZE)
    np.testing.assert_allclose(np.asarray(sp), np.asarray(sp_ref),
                               rtol=1e-2, atol=1e-2)
    np.testing.assert_allclose(np.asarray(dp), np.asarray(dp_ref),
                               rtol=1e-2, atol=1e-2)

    print("KERNEL_OK")
</pallas_src>

<mosaic_0001>
module attributes {stable_mosaic.version = 11 : i64} {
  func.func @_tcn_kernel(%arg0: memref<8x128xf32, #tpu.memory_space<vmem>>, %arg1: memref<288x128xf32, #tpu.memory_space<vmem>>, %arg2: memref<1x128xf32, #tpu.memory_space<vmem>>) attributes {dimension_semantics = [], scalar_prefetch = 0 : i64, scratch_operands = 0 : i64, tpu.core_type = #tpu.core_type<tc>} {
    %0 = tpu.iota {dimensions = array<i32: 1>} : vector<1x128xi32>
    %c64_i32 = arith.constant 64 : i32
    %c0_i32 = arith.constant 0 : i32
    %1 = arith.cmpi eq, %c64_i32, %c0_i32 : i32
    %c1_i32 = arith.constant 1 : i32
    %2 = arith.select %1, %c1_i32, %c64_i32 : i32
    %3 = vector.broadcast %2 : i32 to vector<1x128xi32>
    %4 = arith.remsi %0, %3 : vector<1x128xi32>
    %c0_i32_0 = arith.constant 0 : i32
    %5 = vector.broadcast %c0_i32_0 : i32 to vector<1x128xi32>
    %6 = arith.cmpi ne, %4, %5 : vector<1x128xi32>
    %c0_i32_1 = arith.constant 0 : i32
    %7 = vector.broadcast %c0_i32_1 : i32 to vector<1x128xi32>
    %8 = arith.cmpi slt, %4, %7 : vector<1x128xi32>
    %c0_i32_2 = arith.constant 0 : i32
    %9 = arith.cmpi slt, %2, %c0_i32_2 : i32
    %10 = vector.broadcast %9 : i1 to vector<1x128xi1>
    %11 = vector.broadcast %10 : vector<1x128xi1> to vector<1x128xi1>
    %12 = arith.xori %8, %11 : vector<1x128xi1>
    %13 = arith.andi %12, %6 : vector<1x128xi1>
    %14 = vector.broadcast %2 : i32 to vector<1x128xi32>
    %15 = arith.addi %4, %14 : vector<1x128xi32>
    %16 = arith.select %13, %15, %4 : vector<1x128xi1>, vector<1x128xi32>
    %c0 = arith.constant 0 : index
    %c0_3 = arith.constant 0 : index
    %17 = vector.load %arg0[%c0, %c0_3] : memref<8x128xf32, #tpu.memory_space<vmem>>, vector<8x128xf32>
    %c1_i32_4 = arith.constant 1 : i32
    %18 = vector.broadcast %c1_i32_4 : i32 to vector<1x128xi32>
    %19 = arith.cmpi sge, %16, %18 : vector<1x128xi32>
    %c1_i32_5 = arith.constant 1 : i32
    %20 = tpu.dynamic_rotate %17 by %c1_i32_5 dim 1 : vector<8x128xf32>, i32 -> vector<8x128xf32>
    %cst = arith.constant 0.000000e+00 : f32
    %21 = vector.shape_cast %19 : vector<1x128xi1> to vector<1x128xi1>
    %22 = vector.broadcast %21 : vector<1x128xi1> to vector<8x128xi1>
    %23 = vector.broadcast %cst : f32 to vector<8x128xf32>
    %24 = arith.select %22, %20, %23 : vector<8x128xi1>, vector<8x128xf32>
    %c2_i32 = arith.constant 2 : i32
    %25 = vector.broadcast %c2_i32 : i32 to vector<1x128xi32>
    %26 = arith.cmpi sge, %16, %25 : vector<1x128xi32>
    %c2_i32_6 = arith.constant 2 : i32
    %27 = tpu.dynamic_rotate %17 by %c2_i32_6 dim 1 : vector<8x128xf32>, i32 -> vector<8x128xf32>
    %cst_7 = arith.constant 0.000000e+00 : f32
    %28 = vector.shape_cast %26 : vector<1x128xi1> to vector<1x128xi1>
    %29 = vector.broadcast %28 : vector<1x128xi1> to vector<8x128xi1>
    %30 = vector.broadcast %cst_7 : f32 to vector<8x128xf32>
    %31 = arith.select %29, %27, %30 : vector<8x128xi1>, vector<8x128xf32>
    %c3_i32 = arith.constant 3 : i32
    %32 = vector.broadcast %c3_i32 : i32 to vector<1x128xi32>
    %33 = arith.cmpi sge, %16, %32 : vector<1x128xi32>
    %c3_i32_8 = arith.constant 3 : i32
    %34 = tpu.dynamic_rotate %17 by %c3_i32_8 dim 1 : vector<8x128xf32>, i32 -> vector<8x128xf32>
    %cst_9 = arith.constant 0.000000e+00 : f32
    %35 = vector.shape_cast %33 : vector<1x128xi1> to vector<1x128xi1>
    %36 = vector.broadcast %35 : vector<1x128xi1> to vector<8x128xi1>
    %37 = vector.broadcast %cst_9 : f32 to vector<8x128xf32>
    %38 = arith.select %36, %34, %37 : vector<8x128xi1>, vector<8x128xf32>
    %c4_i32 = arith.constant 4 : i32
    %39 = vector.broadcast %c4_i32 : i32 to vector<1x128xi32>
    %40 = arith.cmpi sge, %16, %39 : vector<1x128xi32>
    %c4_i32_10 = arith.constant 4 : i32
    %41 = tpu.dynamic_rotate %17 by %c4_i32_10 dim 1 : vector<8x128xf32>, i32 -> vector<8x128xf32>
    %cst_11 = arith.constant 0.000000e+00 : f32
    %42 = vector.shape_cast %40 : vector<1x128xi1> to vector<1x128xi1>
    %43 = vector.broadcast %42 : vector<1x128xi1> to vector<8x128xi1>
    %44 = vector.broadcast %cst_11 : f32 to vector<8x128xf32>
    %45 = arith.select %43, %41, %44 : vector<8x128xi1>, vector<8x128xf32>
    %46 = tpu.concatenate %17, %24, %31, %38, %45 in 0 : vector<8x128xf32>, vector<8x128xf32>, vector<8x128xf32>, vector<8x128xf32>, vector<8x128xf32> -> vector<40x128xf32>
    %c0_12 = arith.constant 0 : index
    %c0_13 = arith.constant 0 : index
    %47 = vector.load %arg1[%c0_12, %c0_13] : memref<288x128xf32, #tpu.memory_space<vmem>>, vector<24x40xf32>
    %cst_14 = arith.constant dense<0.000000e+00> : vector<24x128xf32>
    %48 = tpu.matmul %47, %46, %cst_14 {dimension_numbers = #tpu.dot_dimension_numbers<[1], [0], [0], [1], [0, 0, 1, 1], [], []>} : vector<24x40xf32>, vector<40x128xf32>, vector<24x128xf32> -> vector<24x128xf32>
    %c24 = arith.constant 24 : index
    %c0_15 = arith.constant 0 : index
    %49 = vector.load %arg1[%c24, %c0_15] : memref<288x128xf32, #tpu.memory_space<vmem>>, vector<24x1xf32>
    %50 = vector.broadcast %49 : vector<24x1xf32> to vector<24x128xf32>
    %51 = arith.addf %48, %50 : vector<24x128xf32>
    %52 = vector.extract_strided_slice %51 {offsets = [0, 0], sizes = [16, 128], strides = [1, 1]} : vector<24x128xf32> to vector<16x128xf32>
    %cst_16 = arith.constant 0.000000e+00 : f32
    %53 = vector.broadcast %cst_16 : f32 to vector<16x128xf32>
    %54 = arith.maximumf %52, %53 : vector<16x128xf32>
    %55 = vector.extract_strided_slice %51 {offsets = [16, 0], sizes = [8, 128], strides = [1, 1]} : vector<24x128xf32> to vector<8x128xf32>
    %c1_i32_17 = arith.constant 1 : i32
    %56 = vector.broadcast %c1_i32_17 : i32 to vector<1x128xi32>
    %57 = arith.cmpi sge, %16, %56 : vector<1x128xi32>
    %c1_i32_18 = arith.constant 1 : i32
    %58 = tpu.dynamic_rotate %54 by %c1_i32_18 dim 1 : vector<16x128xf32>, i32 -> vector<16x128xf32>
    %cst_19 = arith.constant 0.000000e+00 : f32
    %59 = vector.shape_cast %57 : vector<1x128xi1> to vector<1x128xi1>
    %60 = vector.broadcast %59 : vector<1x128xi1> to vector<16x128xi1>
    %61 = vector.broadcast %cst_19 : f32 to vector<16x128xf32>
    %62 = arith.select %60, %58, %61 : vector<16x128xi1>, vector<16x128xf32>
    %c2_i32_20 = arith.constant 2 : i32
    %63 = vector.broadcast %c2_i32_20 : i32 to vector<1x128xi32>
    %64 = arith.cmpi sge, %16, %63 : vector<1x128xi32>
    %c2_i32_21 = arith.constant 2 : i32
    %65 = tpu.dynamic_rotate %54 by %c2_i32_21 dim 1 : vector<16x128xf32>, i32 -> vector<16x128xf32>
    %cst_22 = arith.constant 0.000000e+00 : f32
    %66 = vector.shape_cast %64 : vector<1x128xi1> to vector<1x128xi1>
    %67 = vector.broadcast %66 : vector<1x128xi1> to vector<16x128xi1>
    %68 = vector.broadcast %cst_22 : f32 to vector<16x128xf32>
    %69 = arith.select %67, %65, %68 : vector<16x128xi1>, vector<16x128xf32>
    %c3_i32_23 = arith.constant 3 : i32
    %70 = vector.broadcast %c3_i32_23 : i32 to vector<1x128xi32>
    %71 = arith.cmpi sge, %16, %70 : vector<1x128xi32>
    %c3_i32_24 = arith.constant 3 : i32
    %72 = tpu.dynamic_rotate %54 by %c3_i32_24 dim 1 : vector<16x128xf32>, i32 -> vector<16x128xf32>
    %cst_25 = arith.constant 0.000000e+00 : f32
    %73 = vector.shape_cast %71 : vector<1x128xi1> to vector<1x128xi1>
    %74 = vector.broadcast %73 : vector<1x128xi1> to vector<16x128xi1>
    %75 = vector.broadcast %cst_25 : f32 to vector<16x128xf32>
    %76 = arith.select %74, %72, %75 : vector<16x128xi1>, vector<16x128xf32>
    %c4_i32_26 = arith.constant 4 : i32
    %77 = vector.broadcast %c4_i32_26 : i32 to vector<1x128xi32>
    %78 = arith.cmpi sge, %16, %77 : vector<1x128xi32>
    %c4_i32_27 = arith.constant 4 : i32
    %79 = tpu.dynamic_rotate %54 by %c4_i32_27 dim 1 : vector<16x128xf32>, i32 -> vector<16x128xf32>
    %cst_28 = arith.constant 0.000000e+00 : f32
    %80 = vector.shape_cast %78 : vector<1x128xi1> to vector<1x128xi1>
    %81 = vector.broadcast %80 : vector<1x128xi1> to vector<16x128xi1>
    %82 = vector.broadcast %cst_28 : f32 to vector<16x128xf32>
    %83 = arith.select %81, %79, %82 : vector<16x128xi1>, vector<16x128xf32>
    %84 = vector.extract_strided_slice %54 {offsets = [0, 0], sizes = [8, 128], strides = [1, 1]} : vector<16x128xf32> to vector<8x128xf32>
    %85 = vector.extract_strided_slice %62 {offsets = [0, 0], sizes = [8, 128], strides = [1, 1]} : vector<16x128xf32> to vector<8x128xf32>
    %86 = vector.extract_strided_slice %69 {offsets = [0, 0], sizes = [8, 128], strides = [1, 1]} : vector<16x128xf32> to vector<8x128xf32>
    %87 = vector.extract_strided_slice %54 {offsets = [8, 0], sizes = [8, 128], strides = [1, 1]} : vector<16x128xf32> to vector<8x128xf32>
    %88 = vector.extract_strided_slice %62 {offsets = [8, 0], sizes = [8, 128], strides = [1, 1]} : vector<16x128xf32> to vector<8x128xf32>
    %89 = vector.extract_strided_slice %69 {offsets = [8, 0], sizes = [8, 128], strides = [1, 1]} : vector<16x128xf32> to vector<8x128xf32>
    %90 = vector.extract_strided_slice %76 {offsets = [8, 0], sizes = [8, 128], strides = [1, 1]} : vector<16x128xf32> to vector<8x128xf32>
    %91 = vector.extract_strided_slice %83 {offsets = [8, 0], sizes = [8, 128], strides = [1, 1]} : vector<16x128xf32> to vector<8x128xf32>
    %92 = tpu.concatenate %84, %85, %86, %87, %88, %89, %90, %91 in 0 : vector<8x128xf32>, vector<8x128xf32>, vector<8x128xf32>, vector<8x128xf32>, vector<8x128xf32>, vector<8x128xf32>, vector<8x128xf32>, vector<8x128xf32> -> vector<64x128xf32>
    %c48 = arith.constant 48 : index
    %c0_29 = arith.constant 0 : index
    %93 = vector.load %arg1[%c48, %c0_29] : memref<288x128xf32, #tpu.memory_space<vmem>>, vector<16x64xf32>
    %cst_30 = arith.constant dense<0.000000e+00> : vector<16x128xf32>
    %94 = tpu.matmul %93, %92, %cst_30 {dimension_numbers = #tpu.dot_dimension_numbers<[1], [0], [0], [1], [0, 0, 1, 1], [], []>} : vector<16x64xf32>, vector<64x128xf32>, vector<16x128xf32> -> vector<16x128xf32>
    %c64 = arith.constant 64 : index
    %c0_31 = arith.constant 0 : index
    %95 = vector.load %arg1[%c64, %c0_31] : memref<288x128xf32, #tpu.memory_space<vmem>>, vector<16x1xf32>
    %96 = vector.broadcast %95 : vector<16x1xf32> to vector<16x128xf32>
    %97 = arith.addf %94, %96 : vector<16x128xf32>
    %cst_32 = arith.constant 0.000000e+00 : f32
    %98 = vector.broadcast %cst_32 : f32 to vector<16x128xf32>
    %99 = arith.maximumf %97, %98 : vector<16x128xf32>
    %100 = vector.extract_strided_slice %99 {offsets = [0, 0], sizes = [8, 128], strides = [1, 1]} : vector<16x128xf32> to vector<8x128xf32>
    %101 = vector.extract_strided_slice %99 {offsets = [8, 0], sizes = [8, 128], strides = [1, 1]} : vector<16x128xf32> to vector<8x128xf32>
    %102 = arith.addf %100, %101 : vector<8x128xf32>
    %103 = arith.addf %102, %55 : vector<8x128xf32>
    %cst_33 = arith.constant 0.000000e+00 : f32
    %104 = vector.broadcast %cst_33 : f32 to vector<8x128xf32>
    %105 = arith.maximumf %103, %104 : vector<8x128xf32>
    %c2_i32_34 = arith.constant 2 : i32
    %106 = vector.broadcast %c2_i32_34 : i32 to vector<1x128xi32>
    %107 = arith.cmpi sge, %16, %106 : vector<1x128xi32>
    %c2_i32_35 = arith.constant 2 : i32
    %108 = tpu.dynamic_rotate %105 by %c2_i32_35 dim 1 : vector<8x128xf32>, i32 -> vector<8x128xf32>
    %cst_36 = arith.constant 0.000000e+00 : f32
    %109 = vector.shape_cast %107 : vector<1x128xi1> to vector<1x128xi1>
    %110 = vector.broadcast %109 : vector<1x128xi1> to vector<8x128xi1>
    %111 = vector.broadcast %cst_36 : f32 to vector<8x128xf32>
    %112 = arith.select %110, %108, %111 : vector<8x128xi1>, vector<8x128xf32>
    %c4_i32_37 = arith.constant 4 : i32
    %113 = vector.broadcast %c4_i32_37 : i32 to vector<1x128xi32>
    %114 = arith.cmpi sge, %16, %113 : vector<1x128xi32>
    %c4_i32_38 = arith.constant 4 : i32
    %115 = tpu.dynamic_rotate %105 by %c4_i32_38 dim 1 : vector<8x128xf32>, i32 -> vector<8x128xf32>
    %cst_39 = arith.constant 0.000000e+00 : f32
    %116 = vector.shape_cast %114 : vector<1x128xi1> to vector<1x128xi1>
    %117 = vector.broadcast %116 : vector<1x128xi1> to vector<8x128xi1>
    %118 = vector.broadcast %cst_39 : f32 to vector<8x128xf32>
    %119 = arith.select %117, %115, %118 : vector<8x128xi1>, vector<8x128xf32>
    %c6_i32 = arith.constant 6 : i32
    %120 = vector.broadcast %c6_i32 : i32 to vector<1x128xi32>
    %121 = arith.cmpi sge, %16, %120 : vector<1x128xi32>
    %c6_i32_40 = arith.constant 6 : i32
    %122 = tpu.dynamic_rotate %105 by %c6_i32_40 dim 1 : vector<8x128xf32>, i32 -> vector<8x128xf32>
    %cst_41 = arith.constant 0.000000e+00 : f32
    %123 = vector.shape_cast %121 : vector<1x128xi1> to vector<1x128xi1>
    %124 = vector.broadcast %123 : vector<1x128xi1> to vector<8x128xi1>
    %125 = vector.broadcast %cst_41 : f32 to vector<8x128xf32>
    %126 = arith.select %124, %122, %125 : vector<8x128xi1>, vector<8x128xf32>
    %c8_i32 = arith.constant 8 : i32
    %127 = vector.broadcast %c8_i32 : i32 to vector<1x128xi32>
    %128 = arith.cmpi sge, %16, %127 : vector<1x128xi32>
    %c8_i32_42 = arith.constant 8 : i32
    %129 = tpu.dynamic_rotate %105 by %c8_i32_42 dim 1 : vector<8x128xf32>, i32 -> vector<8x128xf32>
    %cst_43 = arith.constant 0.000000e+00 : f32
    %130 = vector.shape_cast %128 : vector<1x128xi1> to vector<1x128xi1>
    %131 = vector.broadcast %130 : vector<1x128xi1> to vector<8x128xi1>
    %132 = vector.broadcast %cst_43 : f32 to vector<8x128xf32>
    %133 = arith.select %131, %129, %132 : vector<8x128xi1>, vector<8x128xf32>
    %134 = tpu.concatenate %105, %112, %119, %126, %133 in 0 : vector<8x128xf32>, vector<8x128xf32>, vector<8x128xf32>, vector<8x128xf32>, vector<8x128xf32> -> vector<40x128xf32>
    %c80 = arith.constant 80 : index
    %c0_44 = arith.constant 0 : index
    %135 = vector.load %arg1[%c80, %c0_44] : memref<288x128xf32, #tpu.memory_space<vmem>>, vector<16x40xf32>
    %cst_45 = arith.constant dense<0.000000e+00> : vector<16x128xf32>
    %136 = tpu.matmul %135, %134, %cst_45 {dimension_numbers = #tpu.dot_dimension_numbers<[1], [0], [0], [1], [0, 0, 1, 1], [], []>} : vector<16x40xf32>, vector<40x128xf32>, vector<16x128xf32> -> vector<16x128xf32>
    %c96 = arith.constant 96 : index
    %c0_46 = arith.constant 0 : index
    %137 = vector.load %arg1[%c96, %c0_46] : memref<288x128xf32, #tpu.memory_space<vmem>>, vector<16x1xf32>
    %138 = vector.broadcast %137 : vector<16x1xf32> to vector<16x128xf32>
    %139 = arith.addf %136, %138 : vector<16x128xf32>
    %cst_47 = arith.constant 0.000000e+00 : f32
    %140 = vector.broadcast %cst_47 : f32 to vector<16x128xf32>
    %141 = arith.maximumf %139, %140 : vector<16x128xf32>
    %c2_i32_48 = arith.constant 2 : i32
    %142 = vector.broadcast %c2_i32_48 : i32 to vector<1x128xi32>
    %143 = arith.cmpi sge, %16, %142 : vector<1x128xi32>
    %c2_i32_49 = arith.constant 2 : i32
    %144 = tpu.dynamic_rotate %141 by %c2_i32_49 dim 1 : vector<16x128xf32>, i32 -> vector<16x128xf32>
    %cst_50 = arith.constant 0.000000e+00 : f32
    %145 = vector.shape_cast %143 : vector<1x128xi1> to vector<1x128xi1>
    %146 = vector.broadcast %145 : vector<1x128xi1> to vector<16x128xi1>
    %147 = vector.broadcast %cst_50 : f32 to vector<16x128xf32>
    %148 = arith.select %146, %144, %147 : vector<16x128xi1>, vector<16x128xf32>
    %c4_i32_51 = arith.constant 4 : i32
    %149 = vector.broadcast %c4_i32_51 : i32 to vector<1x128xi32>
    %150 = arith.cmpi sge, %16, %149 : vector<1x128xi32>
    %c4_i32_52 = arith.constant 4 : i32
    %151 = tpu.dynamic_rotate %141 by %c4_i32_52 dim 1 : vector<16x128xf32>, i32 -> vector<16x128xf32>
    %cst_53 = arith.constant 0.000000e+00 : f32
    %152 = vector.shape_cast %150 : vector<1x128xi1> to vector<1x128xi1>
    %153 = vector.broadcast %152 : vector<1x128xi1> to vector<16x128xi1>
    %154 = vector.broadcast %cst_53 : f32 to vector<16x128xf32>
    %155 = arith.select %153, %151, %154 : vector<16x128xi1>, vector<16x128xf32>
    %c6_i32_54 = arith.constant 6 : i32
    %156 = vector.broadcast %c6_i32_54 : i32 to vector<1x128xi32>
    %157 = arith.cmpi sge, %16, %156 : vector<1x128xi32>
    %c6_i32_55 = arith.constant 6 : i32
    %158 = tpu.dynamic_rotate %141 by %c6_i32_55 dim 1 : vector<16x128xf32>, i32 -> vector<16x128xf32>
    %cst_56 = arith.constant 0.000000e+00 : f32
    %159 = vector.shape_cast %157 : vector<1x128xi1> to vector<1x128xi1>
    %160 = vector.broadcast %159 : vector<1x128xi1> to vector<16x128xi1>
    %161 = vector.broadcast %cst_56 : f32 to vector<16x128xf32>
    %162 = arith.select %160, %158, %161 : vector<16x128xi1>, vector<16x128xf32>
    %c8_i32_57 = arith.constant 8 : i32
    %163 = vector.broadcast %c8_i32_57 : i32 to vector<1x128xi32>
    %164 = arith.cmpi sge, %16, %163 : vector<1x128xi32>
    %c8_i32_58 = arith.constant 8 : i32
    %165 = tpu.dynamic_rotate %141 by %c8_i32_58 dim 1 : vector<16x128xf32>, i32 -> vector<16x128xf32>
    %cst_59 = arith.constant 0.000000e+00 : f32
    %166 = vector.shape_cast %164 : vector<1x128xi1> to vector<1x128xi1>
    %167 = vector.broadcast %166 : vector<1x128xi1> to vector<16x128xi1>
    %168 = vector.broadcast %cst_59 : f32 to vector<16x128xf32>
    %169 = arith.select %167, %165, %168 : vector<16x128xi1>, vector<16x128xf32>
    %170 = vector.extract_strided_slice %141 {offsets = [0, 0], sizes = [8, 128], strides = [1, 1]} : vector<16x128xf32> to vector<8x128xf32>
    %171 = vector.extract_strided_slice %148 {offsets = [0, 0], sizes = [8, 128], strides = [1, 1]} : vector<16x128xf32> to vector<8x128xf32>
    %172 = vector.extract_strided_slice %155 {offsets = [0, 0], sizes = [8, 128], strides = [1, 1]} : vector<16x128xf32> to vector<8x128xf32>
    %173 = vector.extract_strided_slice %141 {offsets = [8, 0], sizes = [8, 128], strides = [1, 1]} : vector<16x128xf32> to vector<8x128xf32>
    %174 = vector.extract_strided_slice %148 {offsets = [8, 0], sizes = [8, 128], strides = [1, 1]} : vector<16x128xf32> to vector<8x128xf32>
    %175 = vector.extract_strided_slice %155 {offsets = [8, 0], sizes = [8, 128], strides = [1, 1]} : vector<16x128xf32> to vector<8x128xf32>
    %176 = vector.extract_strided_slice %162 {offsets = [8, 0], sizes = [8, 128], strides = [1, 1]} : vector<16x128xf32> to vector<8x128xf32>
    %177 = vector.extract_strided_slice %169 {offsets = [8, 0], sizes = [8, 128], strides = [1, 1]} : vector<16x128xf32> to vector<8x128xf32>
    %178 = tpu.concatenate %170, %171, %172, %173, %174, %175, %176, %177 in 0 : vector<8x128xf32>, vector<8x128xf32>, vector<8x128xf32>, vector<8x128xf32>, vector<8x128xf32>, vector<8x128xf32>, vector<8x128xf32>, vector<8x128xf32> -> vector<64x128xf32>
    %c112 = arith.constant 112 : index
    %c0_60 = arith.constant 0 : index
    %179 = vector.load %arg1[%c112, %c0_60] : memref<288x128xf32, #tpu.memory_space<vmem>>, vector<16x64xf32>
    %cst_61 = arith.constant dense<0.000000e+00> : vector<16x128xf32>
    %180 = tpu.matmul %179, %178, %cst_61 {dimension_numbers = #tpu.dot_dimension_numbers<[1], [0], [0], [1], [0, 0, 1, 1], [], []>} : vector<16x64xf32>, vector<64x128xf32>, vector<16x128xf32> -> vector<16x128xf32>
    %c128 = arith.constant 128 : index
    %c0_62 = arith.constant 0 : index
    %181 = vector.load %arg1[%c128, %c0_62] : memref<288x128xf32, #tpu.memory_space<vmem>>, vector<16x1xf32>
    %182 = vector.broadcast %181 : vector<16x1xf32> to vector<16x128xf32>
    %183 = arith.addf %180, %182 : vector<16x128xf32>
    %cst_63 = arith.constant 0.000000e+00 : f32
    %184 = vector.broadcast %cst_63 : f32 to vector<16x128xf32>
    %185 = arith.maximumf %183, %184 : vector<16x128xf32>
    %186 = vector.extract_strided_slice %185 {offsets = [0, 0], sizes = [8, 128], strides = [1, 1]} : vector<16x128xf32> to vector<8x128xf32>
    %187 = vector.extract_strided_slice %185 {offsets = [8, 0], sizes = [8, 128], strides = [1, 1]} : vector<16x128xf32> to vector<8x128xf32>
    %188 = arith.addf %186, %187 : vector<8x128xf32>
    %189 = arith.addf %188, %105 : vector<8x128xf32>
    %cst_64 = arith.constant 0.000000e+00 : f32
    %190 = vector.broadcast %cst_64 : f32 to vector<8x128xf32>
    %191 = arith.maximumf %189, %190 : vector<8x128xf32>
    %c144 = arith.constant 144 : index
    %c0_65 = arith.constant 0 : index
    %192 = vector.load %arg1[%c144, %c0_65] : memref<288x128xf32, #tpu.memory_space<vmem>>, vector<1x8xf32>
    %cst_66 = arith.constant dense<0.000000e+00> : vector<1x128xf32>
    %193 = tpu.matmul %192, %191, %cst_66 {dimension_numbers = #tpu.dot_dimension_numbers<[1], [0], [0], [1], [0, 0, 1, 1], [], []>} : vector<1x8xf32>, vector<8x128xf32>, vector<1x128xf32> -> vector<1x128xf32>
    %c152 = arith.constant 152 : index
    %c0_67 = arith.constant 0 : index
    %194 = vector.load %arg1[%c152, %c0_67] : memref<288x128xf32, #tpu.memory_space<vmem>>, vector<128x128xf32>
    %cst_68 = arith.constant dense<0.000000e+00> : vector<1x128xf32>
    %195 = tpu.matmul %193, %194, %cst_68 {dimension_numbers = #tpu.dot_dimension_numbers<[1], [0], [0], [1], [0, 0, 1, 1], [], []>} : vector<1x128xf32>, vector<128x128xf32>, vector<1x128xf32> -> vector<1x128xf32>
    %c280 = arith.constant 280 : index
    %c0_69 = arith.constant 0 : index
    %196 = vector.load %arg1[%c280, %c0_69] : memref<288x128xf32, #tpu.memory_space<vmem>>, vector<1x128xf32>
    %197 = arith.addf %195, %196 : vector<1x128xf32>
    %198 = tpu.iota {dimensions = array<i32: 1>} : vector<1x128xi32>
    %c4_i32_70 = arith.constant 4 : i32
    %c0_i32_71 = arith.constant 0 : i32
    %199 = arith.cmpi eq, %c4_i32_70, %c0_i32_71 : i32
    %c1_i32_72 = arith.constant 1 : i32
    %200 = arith.select %199, %c1_i32_72, %c4_i32_70 : i32
    %201 = vector.broadcast %200 : i32 to vector<1x128xi32>
    %202 = arith.remsi %198, %201 : vector<1x128xi32>
    %c0_i32_73 = arith.constant 0 : i32
    %203 = vector.broadcast %c0_i32_73 : i32 to vector<1x128xi32>
    %204 = arith.cmpi ne, %202, %203 : vector<1x128xi32>
    %c0_i32_74 = arith.constant 0 : i32
    %205 = vector.broadcast %c0_i32_74 : i32 to vector<1x128xi32>
    %206 = arith.cmpi slt, %202, %205 : vector<1x128xi32>
    %c0_i32_75 = arith.constant 0 : i32
    %207 = arith.cmpi slt, %200, %c0_i32_75 : i32
    %208 = vector.broadcast %207 : i1 to vector<1x128xi1>
    %209 = vector.broadcast %208 : vector<1x128xi1> to vector<1x128xi1>
    %210 = arith.xori %206, %209 : vector<1x128xi1>
    %211 = arith.andi %210, %204 : vector<1x128xi1>
    %212 = vector.broadcast %200 : i32 to vector<1x128xi32>
    %213 = arith.addi %202, %212 : vector<1x128xi32>
    %214 = arith.select %211, %213, %202 : vector<1x128xi1>, vector<1x128xi32>
    %c1_i32_76 = arith.constant 1 : i32
    %215 = vector.broadcast %c1_i32_76 : i32 to vector<1x128xi32>
    %216 = arith.cmpi eq, %214, %215 : vector<1x128xi32>
    %cst_77 = arith.constant 0.000000e+00 : f32
    %217 = vector.broadcast %cst_77 : f32 to vector<1x128xf32>
    %218 = arith.maximumf %197, %217 : vector<1x128xf32>
    %219 = math.absf %197 : vector<1x128xf32>
    %cst_78 = arith.constant 0.000000e+00 : f32
    %220 = vector.broadcast %cst_78 : f32 to vector<1x128xf32>
    %221 = arith.subf %220, %219 : vector<1x128xf32>
    %222 = math.exp %221 : vector<1x128xf32>
    %cst_79 = arith.constant 1.000000e+00 : f32
    %223 = vector.broadcast %cst_79 : f32 to vector<1x128xf32>
    %224 = arith.addf %223, %222 : vector<1x128xf32>
    %225 = math.log %224 : vector<1x128xf32>
    %226 = arith.addf %218, %225 : vector<1x128xf32>
    %227 = arith.select %216, %197, %226 : vector<1x128xi1>, vector<1x128xf32>
    %c2_i32_80 = arith.constant 2 : i32
    %228 = vector.broadcast %c2_i32_80 : i32 to vector<1x128xi32>
    %229 = arith.cmpi eq, %214, %228 : vector<1x128xi32>
    %cst_81 = arith.constant 1.000000e+00 : f32
    %cst_82 = arith.constant 0.000000e+00 : f32
    %230 = vector.broadcast %cst_81 : f32 to vector<1x128xf32>
    %231 = vector.broadcast %cst_82 : f32 to vector<1x128xf32>
    %232 = arith.select %229, %230, %231 : vector<1x128xi1>, vector<1x128xf32>
    %233 = arith.addf %227, %232 : vector<1x128xf32>
    %c0_83 = arith.constant 0 : index
    %c0_84 = arith.constant 0 : index
    %234 = vector.load %arg2[%c0_83, %c0_84] : memref<1x128xf32, #tpu.memory_space<vmem>>, vector<1x128xf32>
    tpu.vector_store %arg2[%c0_83, %c0_84], %233 {strides = array<i32>} : memref<1x128xf32, #tpu.memory_space<vmem>>, vector<1x128xf32>,
    return
  }
}

</mosaic_0001>

<llo_original>
// kernel: squeeze.1
$region0: #{squeeze.1}
  %s0 = inlined_call_operand.vmem [shape: f32[16], index: 0, kind: input, shape index: {}]
  %s1 = inlined_call_operand.vmem [shape: f32[2,8], index: 1, kind: output, shape index: {}]
  $region1: #{squeeze.1} parent=0
    #allocation0 [shape = 'u8[4096]{0}', space=vmem, size = 0x1000, scoped, tag = 'scoped mem for output reshape']
    #allocation1 [shape = 'u8[4096]{0}', space=vmem, size = 0x1000, scoped, tag = 'scoped mem for input reshape']
    %s3 = ssub.s32 2, 1
    %v4 = vld [vmem:[%s0] sm:%s3]
    %5 = vst [vmem:[#allocation1] sm:%s3] %v4
    %v6 = vld [vmem:[#allocation1] sm:$0x1]
    %vm7 = vcmask 64512
    %8 = vst.msk [vmem:[#allocation0] sm:$0x1] %vm7, %v6
    %v9 = vld [vmem:[#allocation1] sm:$0x1]
    %10 = vrot.lane.b32.xlu0 %v9, 120
    %v11 = vpop.permute.xlu0 %10
    %vm12 = vcmask 64512
    %s13 = scalar_lea.vmem [#allocation0], 1
    %14 = vst.msk [vmem:[%s13] sm:$0x1] %vm12, %v11
    %s16 = ssub.s32 4, 1
    %v17 = vld [vmem:[#allocation0] sm:%s16]
    %s19 = ssub.s32 4, 1
    %20 = vst [vmem:[%s1] sm:%s19] %v17

// kernel: temporal_conv_net_forward.1
$region0: #{temporal_conv_net_forward.1}
  #allocation0 [shape = 'u32[]', space=smem, size = 0x4, offset = 0x4, fixed_abs, tag = 'smem constant byte address 0x4 - core index']
  #allocation1 [shape = 'u32[72,128]{1,0:T(1,128)}', space=vmem, size = 0x9000, scoped, tag = 'internal scratch']
  %s0 = inlined_call_operand.vmem [shape: f32[8,128], index: 0, kind: input, shape index: {}]
  %s1 = inlined_call_operand.hbm [shape: f32[288,128], index: 1, kind: input, shape index: {}]
  %s2 = inlined_call_operand.vmem [shape: f32[1,128], index: 2, kind: output, shape index: {}]
  %s3 = sld [smem:[#allocation0]]
  $region22: #{temporal_conv_net_forward.1} parent=0
    _
  %s5 = ssub.s32 1, %s3
  %s6 = scalar_select 0, %s5, %s3
  $region1: #{temporal_conv_net_forward.1} parent=0
    #allocation2 [shape = 'u8[147456]{0}', space=vmem, size = 0x24000, scoped, tag = 'input window, operand 1, single buffered']
    #allocation3 [shape = 's32[1]{0}', space=sflag, size = 0x4, scoped, tag = 'scoped memory for temporal_conv_net_forward.1']
    %7 = vsyncpa [#allocation3], 0
    // Predicated region
    $region2: #{temporal_conv_net_forward.1} parent=1 // pred_check
      _
    $region3: #{temporal_conv_net_forward.1} parent=1 // pred_check_branch
      %9 = sbr.rel (0) target = $region5
    $region4: #{temporal_conv_net_forward.1} parent=1 // pred_region
      _
    $region5: #{temporal_conv_net_forward.1} parent=1 // pred_fallthru
      _
    // Predicated region
    $region6: #{temporal_conv_net_forward.1} parent=1 // pred_check
      _
    $region7: #{temporal_conv_net_forward.1} parent=1 // pred_check_branch
      %11 = sbr.rel (0) target = $region9
    $region8: #{temporal_conv_net_forward.1} parent=1 // pred_region
      %13 = vsyncadd [#allocation3], 0
      %s14 = sshll.u32 %s1, 4
      %s15 = int_to_ptr.hbm [resolvable:$true] %s14
      %s16 = sshll.u32 [#allocation2], 4
      %s17 = int_to_ptr.vmem [resolvable:$true] %s16
      %22 = dma.hbm_to_vmem [thread:$0]  %s15, 4608, %s17, [#allocation3], 128, 128, 8
    $region9: #{temporal_conv_net_forward.1} parent=1 // pred_fallthru
      _
    // Predicated region
    $region10: #{temporal_conv_net_forward.1} parent=1 // pred_check
      _
    $region11: #{temporal_conv_net_forward.1} parent=1 // pred_check_branch
      %24 = sbr.rel (0) target = $region13
    $region12: #{temporal_conv_net_forward.1} parent=1 // pred_region
      %26 = dma.done [#allocation3], 4608
    $region13: #{temporal_conv_net_forward.1} parent=1 // pred_fallthru
      _
    %v27 = vlaneseq
    %v28 = vand.u32 %v27, 127
    %vm29 = vcmp.lt.s32.totalorder %v28, 0
    %v30 = vsub.s32 0, %v28
    %v31 = vsel %vm29, %v30, %v28
    %v32 = vshrl.u32 %v31, 6
    %v33 = vand.u32 %v31, 63
    %v34 = vsub.s32 0, %v33
    %v35 = vsel %vm29, %v34, %v33
    %vm36 = vcmp.ne.s32.totalorder %v35, 0
    %vm37 = vcmp.lt.s32.totalorder %v35, 0
    %vm38 = vmand %vm37, %vm36
    %v39 = vadd.s32 %v35, 64
    %v40 = vsel %vm38, %v39, %v35
    %v41 = vld [vmem:[%s0] sm:$0xff]
    %vm42 = vcmp.ge.s32.totalorder %v40, 1
    %43 = vrot.lane.b32.xlu0 %v41, 1
    %v44 = vpop.permute.xlu0 %43
    %v45 = vsel %vm42, 1, 0
    %vm46 = vcmp.eq.s32.totalorder %v45, 1
    %v47 = vsel %vm46, %v44, 0.0
    %vm48 = vcmp.ge.s32.totalorder %v40, 2
    %49 = vrot.lane.b32.xlu0 %v41, 2
    %v50 = vpop.permute.xlu0 %49
    %v51 = vsel %vm48, 1, 0
    %vm52 = vcmp.eq.s32.totalorder %v51, 1
    %v53 = vsel %vm52, %v50, 0.0
    %vm54 = vcmp.ge.s32.totalorder %v40, 3
    %55 = vrot.lane.b32.xlu0 %v41, 3
    %v56 = vpop.permute.xlu0 %55
    %v57 = vsel %vm54, 1, 0
    %vm58 = vcmp.eq.s32.totalorder %v57, 1
    %v59 = vsel %vm58, %v56, 0.0
    %vm60 = vcmp.ge.s32.totalorder %v40, 4
    %61 = vrot.lane.b32.xlu0 %v41, 4
    %v62 = vpop.permute.xlu0 %61
    %v63 = vsel %vm60, 1, 0
    %vm64 = vcmp.eq.s32.totalorder %v63, 1
    %v65 = vsel %vm64, %v62, 0.0
    %v66 = vld [vmem:[#allocation2] sm:$0xff]
    %v67 = vld [vmem:[#allocation2 + $0x8] sm:$0xff]
    %v68 = vld [vmem:[#allocation2 + $0x10] sm:$0xff]
    %v69 = vld [vmem:[#allocation2 + $0x18] sm:$0xff]
    %v70 = vld [vmem:[#allocation2 + $0x20] sm:$0xff]
    %v71 = vld [vmem:[#allocation2 + $0x28] sm:$0xff]
    %73 = vset.pattern.permute.xlu0 0
    %74 = vperm.xlu0 %73, %v69
    %v75 = vpop.permute.xlu0 %74
    %78 = vset.pattern.permute.xlu0 0
    %79 = vperm.xlu0 %78, %v70
    %v80 = vpop.permute.xlu0 %79
    %83 = vset.pattern.permute.xlu0 0
    %84 = vperm.xlu0 %83, %v71
    %v85 = vpop.permute.xlu0 %84
    %vm87 = vcmask 326656
    %v89 = vsel %vm87, %v66, 0
    %v92 = vsel %vm87, %v67, 0
    %v95 = vsel %vm87, %v68, 0
    %97 = vmatpush.msra.mxu0 0.0
    %98 = vmatpush.msra.mxu0 0.0
    %99 = vmatpush.msra.mxu0 0.0
    %100 = vmatpush.msra.mxu0 0.0
    %101 = vmatpush.msra.mxu0 0.0
    %102 = vmatpush.msra.mxu0 0.0
    %103 = vmatpush.msra.mxu0 0.0
    %104 = vmatpush.msra.mxu0 0.0
    %105 = vmatpush.msra.mxu0 0.0
    %106 = vmatpush.msra.mxu0 0.0
    %107 = vmatpush.msra.mxu0 0.0
    %108 = vmatpush.msra.mxu0 %v65
    %109 = vmatpush.msra.mxu0 %v59
    %110 = vmatpush.msra.mxu0 %v53
    %111 = vmatpush.msra.mxu0 %v47
    %112 = vmatpush.msra.mxu0 %v41
    %113 = vmatmul.f32.gmra.mxu0 %v89
    %v114 = vpop.f32.mrf.mxu0
    %v115 = vadd.f32 %v75, %v114
    %116 = vmatmul.f32.gmra.mxu0 %v92
    %v117 = vpop.f32.mrf.mxu0
    %v118 = vadd.f32 %v80, %v117
    %119 = vmatmul.f32.gmra.mxu0 %v95
    %v120 = vpop.f32.mrf.mxu0
    %v121 = vadd.f32 %v85, %v120
    %122 = vdwg.mxu0
    %v123 = vmax.f32 %v115, 0.0
    %v124 = vmax.f32 %v118, 0.0
    %125 = vrot.lane.b32.xlu0 %v123, 1
    %v126 = vpop.permute.xlu0 %125
    %127 = vrot.lane.b32.xlu0 %v124, 1
    %v128 = vpop.permute.xlu0 %127
    %v129 = vsel %vm46, %v126, 0.0
    %v130 = vsel %vm46, %v128, 0.0
    %131 = vrot.lane.b32.xlu0 %v123, 2
    %v132 = vpop.permute.xlu0 %131
    %133 = vrot.lane.b32.xlu0 %v124, 2
    %v134 = vpop.permute.xlu0 %133
    %v135 = vsel %vm52, %v132, 0.0
    %v136 = vsel %vm52, %v134, 0.0
    %137 = vrot.lane.b32.xlu0 %v124, 3
    %v138 = vpop.permute.xlu0 %137
    %v139 = vsel %vm58, %v138, 0.0
    %140 = vrot.lane.b32.xlu0 %v124, 4
    %v141 = vpop.permute.xlu0 %140
    %v142 = vsel %vm64, %v141, 0.0
    %v143 = vld [vmem:[#allocation2 + $0x30] sm:$0xff]
    %v144 = vld [vmem:[#allocation2 + $0x38] sm:$0xff]
    %v145 = vld [vmem:[#allocation2 + $0x40] sm:$0xff]
    %v146 = vld [vmem:[#allocation2 + $0x48] sm:$0xff]
    %148 = vset.pattern.permute.xlu0 0
    %149 = vperm.xlu0 %148, %v145
    %v150 = vpop.permute.xlu0 %149
    %153 = vset.pattern.permute.xlu0 0
    %154 = vperm.xlu0 %153, %v146
    %v155 = vpop.permute.xlu0 %154
    %vm157 = vcmask 523264
    %v159 = vsel %vm157, %v143, 0
    %v162 = vsel %vm157, %v144, 0
    %164 = vmatpush.msra.mxu0 0.0
    %165 = vmatpush.msra.mxu0 0.0
    %166 = vmatpush.msra.mxu0 0.0
    %167 = vmatpush.msra.mxu0 0.0
    %168 = vmatpush.msra.mxu0 0.0
    %169 = vmatpush.msra.mxu0 0.0
    %170 = vmatpush.msra.mxu0 0.0
    %171 = vmatpush.msra.mxu0 0.0
    %172 = vmatpush.msra.mxu0 %v142
    %173 = vmatpush.msra.mxu0 %v139
    %174 = vmatpush.msra.mxu0 %v136
    %175 = vmatpush.msra.mxu0 %v130
    %176 = vmatpush.msra.mxu0 %v124
    %177 = vmatpush.msra.mxu0 %v135
    %178 = vmatpush.msra.mxu0 %v129
    %179 = vmatpush.msra.mxu0 %v123
    %180 = vmatmul.f32.gmra.mxu0 %v159
    %v181 = vpop.f32.mrf.mxu0
    %v182 = vadd.f32 %v150, %v181
    %183 = vmatmul.f32.gmra.mxu0 %v162
    %v184 = vpop.f32.mrf.mxu0
    %v185 = vadd.f32 %v155, %v184
    %186 = vdwg.mxu0
    %v187 = vmax.f32 %v182, 0.0
    %v188 = vmax.f32 %v185, 0.0
    %v189 = vadd.f32 %v187, %v188
    %v190 = vadd.f32 %v189, %v121
    %v191 = vmax.f32 %v190, 0.0
    %192 = vrot.lane.b32.xlu0 %v191, 2
    %v193 = vpop.permute.xlu0 %192
    %v194 = vsel %vm52, %v193, 0.0
    %195 = vrot.lane.b32.xlu0 %v191, 4
    %v196 = vpop.permute.xlu0 %195
    %v197 = vsel %vm64, %v196, 0.0
    %vm198 = vcmp.ge.s32.totalorder %v40, 6
    %199 = vrot.lane.b32.xlu0 %v191, 6
    %v200 = vpop.permute.xlu0 %199
    %v201 = vsel %vm198, 1, 0
    %vm202 = vcmp.eq.s32.totalorder %v201, 1
    %v203 = vsel %vm202, %v200, 0.0
    %vm204 = vcmp.ge.s32.totalorder %v40, 8
    %205 = vrot.lane.b32.xlu0 %v191, 8
    %v206 = vpop.permute.xlu0 %205
    %v207 = vsel %vm204, 1, 0
    %vm208 = vcmp.eq.s32.totalorder %v207, 1
    %v209 = vsel %vm208, %v206, 0.0
    %v210 = vld [vmem:[#allocation2 + $0x50] sm:$0xff]
    %v211 = vld [vmem:[#allocation2 + $0x58] sm:$0xff]
    %v212 = vld [vmem:[#allocation2 + $0x60] sm:$0xff]
    %v213 = vld [vmem:[#allocation2 + $0x68] sm:$0xff]
    %215 = vset.pattern.permute.xlu0 0
    %216 = vperm.xlu0 %215, %v212
    %v217 = vpop.permute.xlu0 %216
    %220 = vset.pattern.permute.xlu0 0
    %221 = vperm.xlu0 %220, %v213
    %v222 = vpop.permute.xlu0 %221
    %v225 = vsel %vm87, %v210, 0
    %v228 = vsel %vm87, %v211, 0
    %230 = vmatpush.msra.mxu0 0.0
    %231 = vmatpush.msra.mxu0 0.0
    %232 = vmatpush.msra.mxu0 0.0
    %233 = vmatpush.msra.mxu0 0.0
    %234 = vmatpush.msra.mxu0 0.0
    %235 = vmatpush.msra.mxu0 0.0
    %236 = vmatpush.msra.mxu0 0.0
    %237 = vmatpush.msra.mxu0 0.0
    %238 = vmatpush.msra.mxu0 0.0
    %239 = vmatpush.msra.mxu0 0.0
    %240 = vmatpush.msra.mxu0 0.0
    %241 = vmatpush.msra.mxu0 %v209
    %242 = vmatpush.msra.mxu0 %v203
    %243 = vmatpush.msra.mxu0 %v197
    %244 = vmatpush.msra.mxu0 %v194
    %245 = vmatpush.msra.mxu0 %v191
    %246 = vmatmul.f32.gmra.mxu0 %v225
    %v247 = vpop.f32.mrf.mxu0
    %v248 = vadd.f32 %v217, %v247
    %249 = vmatmul.f32.gmra.mxu0 %v228
    %v250 = vpop.f32.mrf.mxu0
    %v251 = vadd.f32 %v222, %v250
    %252 = vdwg.mxu0
    %v253 = vmax.f32 %v248, 0.0
    %v254 = vmax.f32 %v251, 0.0
    %255 = vrot.lane.b32.xlu0 %v253, 2
    %v256 = vpop.permute.xlu0 %255
    %257 = vrot.lane.b32.xlu0 %v254, 2
    %v258 = vpop.permute.xlu0 %257
    %v259 = vsel %vm52, %v256, 0.0
    %v260 = vsel %vm52, %v258, 0.0
    %261 = vrot.lane.b32.xlu0 %v253, 4
    %v262 = vpop.permute.xlu0 %261
    %263 = vrot.lane.b32.xlu0 %v254, 4
    %v264 = vpop.permute.xlu0 %263
    %v265 = vsel %vm64, %v262, 0.0
    %v266 = vsel %vm64, %v264, 0.0
    %267 = vrot.lane.b32.xlu0 %v254, 6
    %v268 = vpop.permute.xlu0 %267
    %v269 = vsel %vm202, %v268, 0.0
    %270 = vrot.lane.b32.xlu0 %v254, 8
    %v271 = vpop.permute.xlu0 %270
    %v272 = vsel %vm208, %v271, 0.0
    %v273 = vld [vmem:[#allocation2 + $0x70] sm:$0xff]
    %v274 = vld [vmem:[#allocation2 + $0x78] sm:$0xff]
    %v275 = vld [vmem:[#allocation2 + $0x80] sm:$0xff]
    %v276 = vld [vmem:[#allocation2 + $0x88] sm:$0xff]
    %278 = vset.pattern.permute.xlu0 0
    %279 = vperm.xlu0 %278, %v275
    %v280 = vpop.permute.xlu0 %279
    %283 = vset.pattern.permute.xlu0 0
    %284 = vperm.xlu0 %283, %v276
    %v285 = vpop.permute.xlu0 %284
    %v288 = vsel %vm157, %v273, 0
    %v291 = vsel %vm157, %v274, 0
    %293 = vmatpush.msra.mxu0 0.0
    %294 = vmatpush.msra.mxu0 0.0
    %295 = vmatpush.msra.mxu0 0.0
    %296 = vmatpush.msra.mxu0 0.0
    %297 = vmatpush.msra.mxu0 0.0
    %298 = vmatpush.msra.mxu0 0.0
    %299 = vmatpush.msra.mxu0 0.0
    %300 = vmatpush.msra.mxu0 0.0
    %301 = vmatpush.msra.mxu0 %v272
    %302 = vmatpush.msra.mxu0 %v269
    %303 = vmatpush.msra.mxu0 %v266
    %304 = vmatpush.msra.mxu0 %v260
    %305 = vmatpush.msra.mxu0 %v254
    %306 = vmatpush.msra.mxu0 %v265
    %307 = vmatpush.msra.mxu0 %v259
    %308 = vmatpush.msra.mxu0 %v253
    %309 = vmatmul.f32.gmra.mxu0 %v288
    %v310 = vpop.f32.mrf.mxu0
    %v311 = vadd.f32 %v280, %v310
    %312 = vmatmul.f32.gmra.mxu0 %v291
    %v313 = vpop.f32.mrf.mxu0
    %v314 = vadd.f32 %v285, %v313
    %315 = vdwg.mxu0
    %v316 = vmax.f32 %v311, 0.0
    %v317 = vmax.f32 %v314, 0.0
    %v318 = vadd.f32 %v316, %v317
    %v319 = vadd.f32 %v318, %v191
    %v320 = vmax.f32 %v319, 0.0
    %v321 = vld [vmem:[#allocation2 + $0x90] sm:$0x1]
    %vm322 = vcmask 64512
    %v324 = vsel %vm322, %v321, 0
    %326 = vmatpush.msra.mxu0 0.0
    %327 = vmatpush.msra.mxu0 0.0
    %328 = vmatpush.msra.mxu0 0.0
    %329 = vmatpush.msra.mxu0 0.0
    %330 = vmatpush.msra.mxu0 0.0
    %331 = vmatpush.msra.mxu0 0.0
    %332 = vmatpush.msra.mxu0 0.0
    %333 = vmatpush.msra.mxu0 0.0
    %334 = vmatpush.msra.mxu0 0.0
    %335 = vmatpush.msra.mxu0 0.0
    %336 = vmatpush.msra.mxu0 0.0
    %337 = vmatpush.msra.mxu0 0.0
    %338 = vmatpush.msra.mxu0 0.0
    %339 = vmatpush.msra.mxu0 0.0
    %340 = vmatpush.msra.mxu0 0.0
    %341 = vmatpush.msra.mxu0 %v320
    %342 = vmatmul.f32.gmra.mxu0 %v324
    %v343 = vpop.f32.mrf.mxu0
    %v344 = vadd.f32 0.0, %v343
    %345 = vdwg.mxu0
    %v346 = vld [vmem:[#allocation2 + $0x98] sm:$0xff]
    %v347 = vld [vmem:[#allocation2 + $0xa0] sm:$0xff]
    %v348 = vld [vmem:[#allocation2 + $0xa8] sm:$0xff]
    %v349 = vld [vmem:[#allocation2 + $0xb0] sm:$0xff]
    %v350 = vld [vmem:[#allocation2 + $0xb8] sm:$0xff]
    %v351 = vld [vmem:[#allocation2 + $0xc0] sm:$0xff]
    %v352 = vld [vmem:[#allocation2 + $0xc8] sm:$0xff]
    %v353 = vld [vmem:[#allocation2 + $0xd0] sm:$0xff]
    %v354 = vld [vmem:[#allocation2 + $0xd8] sm:$0xff]
    %v355 = vld [vmem:[#allocation2 + $0xe0] sm:$0xff]
    %v356 = vld [vmem:[#allocation2 + $0xe8] sm:$0xff]
    %v357 = vld [vmem:[#allocation2 + $0xf0] sm:$0xff]
    %v358 = vld [vmem:[#allocation2 + $0xf8] sm:$0xff]
    %v359 = vld [vmem:[#allocation2 + $0x100] sm:$0xff]
    %v360 = vld [vmem:[#allocation2 + $0x108] sm:$0xff]
    %v361 = vld [vmem:[#allocation2 + $0x110] sm:$0xff]
    %v362 = vld [vmem:[#allocation2 + $0x118] sm:$0x1]
    %363 = vmatpush.msra.mxu0 %v361
    %364 = vmatpush.msra.mxu0 %v360
    %365 = vmatpush.msra.mxu0 %v359
    %366 = vmatpush.msra.mxu0 %v358
    %367 = vmatpush.msra.mxu0 %v357
    %368 = vmatpush.msra.mxu0 %v356
    %369 = vmatpush.msra.mxu0 %v355
    %370 = vmatpush.msra.mxu0 %v354
    %371 = vmatpush.msra.mxu0 %v353
    %372 = vmatpush.msra.mxu0 %v352
    %373 = vmatpush.msra.mxu0 %v351
    %374 = vmatpush.msra.mxu0 %v350
    %375 = vmatpush.msra.mxu0 %v349
    %376 = vmatpush.msra.mxu0 %v348
    %377 = vmatpush.msra.mxu0 %v347
    %378 = vmatpush.msra.mxu0 %v346
    %379 = vmatmul.f32.gmra.mxu0 %v344
    %v380 = vpop.f32.mrf.mxu0
    %v381 = vadd.f32 %v362, %v380
    %382 = vdwg.mxu0
    %vm383 = vcmp.lt.s32.totalorder %v28, 0
    %v384 = vsub.s32 0, %v28
    %v385 = vsel %vm383, %v384, %v28
    %v386 = vshrl.u32 %v385, 2
    %v387 = vand.u32 %v385, 3
    %v388 = vsub.s32 0, %v387
    %v389 = vsel %vm383, %v388, %v387
    %vm390 = vcmp.ne.s32.totalorder %v389, 0
    %vm391 = vcmp.lt.s32.totalorder %v389, 0
    %vm392 = vmand %vm391, %vm390
    %v393 = vadd.s32 %v389, 4
    %v394 = vsel %vm392, %v393, %v389
    %vm395 = vcmp.eq.s32.totalorder %v394, 1
    %v396 = vmax.f32 %v381, 0.0
    %v397 = vand.u32 2147483647, %v381
    %v398 = vsub.f32 0.0, %v397
    %v399 = vmul.f32 %v398, 1.442695
    %v400 = vpow.pop %v399
    %v401 = vadd.f32 %v400, 1.0
    %v402 = vlog2.pop %v401
    %v403 = vmul.f32 %v402, 0.6931472
    %v404 = vadd.f32 %v396, %v403
    %v405 = vsel %vm395, %v381, %v404
    %vm406 = vcmp.eq.s32.totalorder %v394, 2
    %v407 = vsel %vm406, 1.0, 0.0
    %v408 = vadd.f32 %v405, %v407
    %409 = vst [vmem:[%s2] sm:$0x1] %v408
    // Predicated region
    $region14: #{temporal_conv_net_forward.1} parent=1 // pred_check
      _
    $region15: #{temporal_conv_net_forward.1} parent=1 // pred_check_branch
      %411 = sbr.rel (0) target = $region17
    $region16: #{temporal_conv_net_forward.1} parent=1 // pred_region
      _
    $region17: #{temporal_conv_net_forward.1} parent=1 // pred_fallthru
      _
    // Predicated region
    $region18: #{temporal_conv_net_forward.1} parent=1 // pred_check
      _
    $region19: #{temporal_conv_net_forward.1} parent=1 // pred_check_branch
      %413 = sbr.rel (0) target = $region21
    $region20: #{temporal_conv_net_forward.1} parent=1 // pred_region
      _
    $region21: #{temporal_conv_net_forward.1} parent=1 // pred_fallthru
      _
    %414 = vsyncpa [#allocation3], 1

</llo_original>
